<compile_context>
chip_gen: v5e
topology: v5e:2x2
jax: 0.10.0
libtpu: 0.0.40
codegen_flags: <defaults>
</compile_context>

<pallas_src>
import functools

import jax
import jax.numpy as jnp
from jax.experimental import pallas as pl
from jax.experimental.pallas import tpu as pltpu


def _round_up(x, m):
    return (x + m - 1) // m * m


def _fused_autoencoder_kernel(x_ref, we_ref, be_ref, wd_ref, bd_ref,
                              enc_ref, dec_ref, acc_ref, *, n_d):
    # x_ref:   (tile_b, tile_d)  bf16   flattened-frame K tile (encoder phase)
    # we_ref:  (tile_d, l_pad)   bf16   encoder weight K tile (already (in, out))
    # be_ref:  (1, l_pad)        f32    encoder bias
    # wd_ref:  (l_pad, tile_d)   bf16   decoder weight N tile (already (in, out))
    # bd_ref:  (1, tile_d)       f32    decoder bias N tile
    # enc_ref: (tile_b, l_pad)   f32    encoder output block (written once)
    # dec_ref: (tile_b, tile_d)  f32    decoder output N tile
    # acc_ref: (tile_b, l_pad)   f32    VMEM scratch accumulator (the encoding)
    j = pl.program_id(1)

    @pl.when(j == 0)
    def _init():
        acc_ref[...] = jnp.zeros_like(acc_ref)

    @pl.when(j < n_d)
    def _encode_accumulate():
        acc_ref[...] += jnp.dot(x_ref[...], we_ref[...],
                                preferred_element_type=jnp.float32)

    @pl.when(j == n_d - 1)
    def _encode_finalize():
        # Bias added exactly once (last K step), not per K iteration.
        acc_ref[...] += be_ref[...]
        enc_ref[...] = acc_ref[...].astype(enc_ref.dtype)

    @pl.when(j >= n_d)
    def _decode():
        enc_bf16 = acc_ref[...].astype(jnp.bfloat16)
        dec = jnp.dot(enc_bf16, wd_ref[...],
                      preferred_element_type=jnp.float32) + bd_ref[...]
        # f32 output to match the PyTorch module; could be bf16 to halve the
        # writeback (relevant on v5e's single store slot).
        dec_ref[...] = dec.astype(dec_ref.dtype)


def prepare_encoder_template_params(w_enc, b_enc, w_dec, b_dec, input_shape,
                                    *, tile_d=512):
    """One-time parameter prep (do this OUTSIDE the per-step forward):
    transpose torch (out, in) weights to (in, out) so the kernel computes x @ W,
    zero-pad latent_dim to 128 lanes and img_size to the D tile, cast to bf16."""
    input_shape = tuple(int(d) for d in input_shape)
    latent_dim = int(w_enc.shape[0])
    img_size = 1
    for d in input_shape:
        img_size *= d

    l_pad = _round_up(max(latent_dim, 1), 128)
    tile_d = min(int(tile_d), _round_up(img_size, 128))
    d_pad = _round_up(img_size, tile_d)

    we = jnp.zeros((d_pad, l_pad), jnp.bfloat16)
    we = we.at[:img_size, :latent_dim].set(w_enc.T.astype(jnp.bfloat16))
    wd = jnp.zeros((l_pad, d_pad), jnp.bfloat16)
    wd = wd.at[:latent_dim, :img_size].set(w_dec.T.astype(jnp.bfloat16))
    be = jnp.zeros((1, l_pad), jnp.float32)
    be = be.at[0, :latent_dim].set(b_enc.astype(jnp.float32))
    bd = jnp.zeros((1, d_pad), jnp.float32)
    bd = bd.at[0, :img_size].set(b_dec.astype(jnp.float32))

    return {
        "we": we, "be": be, "wd": wd, "bd": bd,
        "input_shape": input_shape, "latent_dim": latent_dim,
        "img_size": img_size, "l_pad": l_pad, "d_pad": d_pad, "tile_d": tile_d,
    }


def encoder_template_forward(frames, params):
    """EncoderTemplate.forward: returns (encoding (B, L), decoding (B, *shape))."""
    input_shape = params["input_shape"]
    latent_dim = params["latent_dim"]
    img_size = params["img_size"]
    l_pad = params["l_pad"]
    d_pad = params["d_pad"]
    tile_d = params["tile_d"]

    B = frames.shape[0]
    # M tile: multiple of 8 sublanes; 128 is safe on all generations
    # (could be raised to 256 on v6e/v7x for large batches).
    tile_b = min(_round_up(B, 8), 128)
    b_pad = _round_up(B, tile_b)

    # torch .view(B, -1) equivalent; cheap per-call cast/pad of activations only
    # (no per-call weight transposes).
    x = frames.reshape(B, img_size).astype(jnp.bfloat16)
    x = jnp.pad(x, ((0, b_pad - B), (0, d_pad - img_size)))

    n_b = b_pad // tile_b
    n_d = d_pad // tile_d
    grid = (n_b, 2 * n_d)

    kernel = functools.partial(_fused_autoencoder_kernel, n_d=n_d)

    flops = 4 * b_pad * d_pad * l_pad  # two matmuls, 2 flops/MAC
    bytes_accessed = (
        x.size * 2                              # x (bf16)
        + d_pad * l_pad * 2 * 2                 # both weights (bf16)
        + (l_pad + d_pad) * 4                   # biases (f32)
        + b_pad * l_pad * 4 + b_pad * d_pad * 4  # enc + dec outputs (f32)
    )

    enc, dec = pl.pallas_call(
        kernel,
        out_shape=(
            jax.ShapeDtypeStruct((b_pad, l_pad), jnp.float32),
            jax.ShapeDtypeStruct((b_pad, d_pad), jnp.float32),
        ),
        grid_spec=pltpu.PrefetchScalarGridSpec(
            num_scalar_prefetch=0,
            grid=grid,
            in_specs=[
                # x: K tile during encoder phase; parked on last K block after.
                pl.BlockSpec((tile_b, tile_d),
                             lambda i, j: (i, jnp.minimum(j, n_d - 1))),
                # We: K tile during encoder phase.
                pl.BlockSpec((tile_d, l_pad),
                             lambda i, j: (jnp.minimum(j, n_d - 1), 0)),
                # be: whole (1, l_pad) bias, resident.
                pl.BlockSpec((1, l_pad), lambda i, j: (0, 0)),
                # Wd: N tile during decoder phase; parked on block 0 before.
                pl.BlockSpec((l_pad, tile_d),
                             lambda i, j: (0, jnp.maximum(j - n_d, 0))),
                # bd: N tile during decoder phase.
                pl.BlockSpec((1, tile_d),
                             lambda i, j: (0, jnp.maximum(j - n_d, 0))),
            ],
            out_specs=(
                # enc: one lane-dense (tile_b, 128) block per batch tile.
                pl.BlockSpec((tile_b, l_pad), lambda i, j: (i, 0)),
                # dec: lane-dense N tiles written during the decoder phase.
                pl.BlockSpec((tile_b, tile_d),
                             lambda i, j: (i, jnp.maximum(j - n_d, 0))),
            ),
            scratch_shapes=[pltpu.VMEM((tile_b, l_pad), jnp.float32)],
        ),
        compiler_params=pltpu.CompilerParams(
            # batch axis shards across TensorCores (v7x megacore);
            # phase/K/N axis carries the scratch dependency -> arbitrary.
            dimension_semantics=("parallel", "arbitrary"),
            # Explicit scoped-VMEM budget; tiles here use ~1 MiB, well under the
            # 64 MiB physical VMEM of v7x (128 MiB on v5e/v6e).
            vmem_limit_bytes=32 * 1024 * 1024,
        ),
        cost_estimate=pl.CostEstimate(
            flops=int(flops), transcendentals=0,
            bytes_accessed=int(bytes_accessed)),
    )(x, params["we"], params["be"], params["wd"], params["bd"])

    # Strip batch/latent/img_size padding before returning.
    encoding = enc[:B, :latent_dim]
    decoding = dec[:B, :img_size].reshape((-1,) + input_shape)
    return encoding, decoding


if __name__ == "__main__":
    # Small, deterministic setup.
    input_shape = (4, 16, 16)          # (C, H, W)
    B = 2
    latent_dim = 32
    img_size = input_shape[0] * input_shape[1] * input_shape[2]  # 1024

    key = jax.random.PRNGKey(0)
    k_x, k_we, k_be, k_wd, k_bd = jax.random.split(key, 5)

    frames = jax.random.normal(k_x, (B,) + input_shape, dtype=jnp.float32)
    # Deterministic "Linear" parameters (torch convention: weight is (out, in)).
    w_enc = jax.random.normal(k_we, (latent_dim, img_size), dtype=jnp.float32) * 0.02
    b_enc = jax.random.normal(k_be, (latent_dim,), dtype=jnp.float32) * 0.01
    w_dec = jax.random.normal(k_wd, (img_size, latent_dim), dtype=jnp.float32) * 0.02
    b_dec = jax.random.normal(k_bd, (img_size,), dtype=jnp.float32) * 0.01

    # One-time weight layout prep (transpose/pad/bf16) outside the forward.
    params = prepare_encoder_template_params(w_enc, b_enc, w_dec, b_dec,
                                             input_shape)

    encoding, decoding = encoder_template_forward(frames, params)
    jax.block_until_ready((encoding, decoding))

    assert encoding.shape == (B, latent_dim)
    assert decoding.shape == (B,) + input_shape

    # Reference with the same bf16-input / f32-accumulate precision as the MXU.
    x_flat = frames.reshape(B, img_size)
    x_bf = x_flat.astype(jnp.bfloat16)
    we_bf = w_enc.T.astype(jnp.bfloat16)
    wd_bf = w_dec.T.astype(jnp.bfloat16)
    enc_ref = jnp.dot(x_bf, we_bf, preferred_element_type=jnp.float32) + b_enc
    dec_ref = (jnp.dot(enc_ref.astype(jnp.bfloat16), wd_bf,
                       preferred_element_type=jnp.float32) + b_dec
               ).reshape((-1,) + input_shape)
    assert jnp.allclose(encoding, enc_ref, atol=1e-2, rtol=1e-2)
    assert jnp.allclose(decoding, dec_ref, atol=1e-2, rtol=1e-2)

    # Loose check against the pure-f32 PyTorch-style reference.
    enc_f32 = x_flat @ w_enc.T + b_enc
    dec_f32 = (enc_f32 @ w_dec.T + b_dec).reshape((-1,) + input_shape)
    assert jnp.allclose(encoding, enc_f32, atol=1e-1, rtol=1e-1)
    assert jnp.allclose(decoding, dec_f32, atol=1e-1, rtol=1e-1)

    print("KERNEL_OK")
</pallas_src>

<mosaic_0001>
module attributes {stable_mosaic.version = 11 : i64} {
  func.func @_fused_autoencoder_kernel(%arg0: i32, %arg1: i32, %arg2: memref<8x512xbf16, #tpu.memory_space<vmem>>, %arg3: memref<512x128xbf16, #tpu.memory_space<vmem>>, %arg4: memref<1x128xf32, #tpu.memory_space<vmem>>, %arg5: memref<128x512xbf16, #tpu.memory_space<vmem>>, %arg6: memref<1x512xf32, #tpu.memory_space<vmem>>, %arg7: memref<8x128xf32, #tpu.memory_space<vmem>>, %arg8: memref<8x512xf32, #tpu.memory_space<vmem>>, %arg9: memref<8x128xf32, #tpu.memory_space<vmem>>) attributes {dimension_semantics = [#tpu.dimension_semantics<parallel>, #tpu.dimension_semantics<arbitrary>], iteration_bounds = array<i64: 1, 4>, scalar_prefetch = 0 : i64, scratch_operands = 1 : i64, tpu.core_type = #tpu.core_type<tc>, window_params = [{transform_indices = @transform_0, window_bounds = array<i64: 8, 512>}, {transform_indices = @transform_1, window_bounds = array<i64: 512, 128>}, {pipeline_mode = #tpu.pipeline_mode<synchronous>, transform_indices = @transform_2, window_bounds = array<i64: 1, 128>}, {transform_indices = @transform_3, window_bounds = array<i64: 128, 512>}, {transform_indices = @transform_4, window_bounds = array<i64: 1, 512>}, {transform_indices = @transform_5, window_bounds = array<i64: 8, 128>}, {transform_indices = @transform_6, window_bounds = array<i64: 8, 512>}]} {
    %c0_i32 = arith.constant 0 : i32
    %0 = arith.cmpi eq, %arg1, %c0_i32 : i32
    %1 = arith.extui %0 : i1 to i32
    %c0_i32_0 = arith.constant 0 : i32
    %2 = arith.cmpi ne, %1, %c0_i32_0 : i32
    scf.if %2 {
      %cst = arith.constant 0.000000e+00 : f32
      %12 = vector.broadcast %cst : f32 to vector<8x128xf32>
      %c0 = arith.constant 0 : index
      %c0_5 = arith.constant 0 : index
      %13 = vector.load %arg9[%c0, %c0_5] : memref<8x128xf32, #tpu.memory_space<vmem>>, vector<8x128xf32>
      tpu.vector_store %arg9[%c0, %c0_5], %12 {strides = array<i32>} : memref<8x128xf32, #tpu.memory_space<vmem>>, vector<8x128xf32>,
    } else {
    }
    %c2_i32 = arith.constant 2 : i32
    %3 = arith.cmpi slt, %arg1, %c2_i32 : i32
    %4 = arith.extui %3 : i1 to i32
    %c0_i32_1 = arith.constant 0 : i32
    %5 = arith.cmpi ne, %4, %c0_i32_1 : i32
    scf.if %5 {
      %c0 = arith.constant 0 : index
      %c0_5 = arith.constant 0 : index
      %12 = vector.load %arg9[%c0, %c0_5] : memref<8x128xf32, #tpu.memory_space<vmem>>, vector<8x128xf32>
      %c0_6 = arith.constant 0 : index
      %c0_7 = arith.constant 0 : index
      %13 = vector.load %arg2[%c0_6, %c0_7] : memref<8x512xbf16, #tpu.memory_space<vmem>>, vector<8x512xbf16>
      %c0_8 = arith.constant 0 : index
      %c0_9 = arith.constant 0 : index
      %14 = vector.load %arg3[%c0_8, %c0_9] : memref<512x128xbf16, #tpu.memory_space<vmem>>, vector<512x128xbf16>
      %cst = arith.constant dense<0.000000e+00> : vector<8x128xf32>
      %15 = tpu.matmul %13, %14, %cst {dimension_numbers = #tpu.dot_dimension_numbers<[1], [0], [0], [1], [0, 0, 1, 1], [], []>} : vector<8x512xbf16>, vector<512x128xbf16>, vector<8x128xf32> -> vector<8x128xf32>
      %16 = arith.addf %12, %15 : vector<8x128xf32>
      %c0_10 = arith.constant 0 : index
      %c0_11 = arith.constant 0 : index
      %17 = vector.load %arg9[%c0_10, %c0_11] : memref<8x128xf32, #tpu.memory_space<vmem>>, vector<8x128xf32>
      tpu.vector_store %arg9[%c0_10, %c0_11], %16 {strides = array<i32>} : memref<8x128xf32, #tpu.memory_space<vmem>>, vector<8x128xf32>,
    } else {
    }
    %c1_i32 = arith.constant 1 : i32
    %6 = arith.cmpi eq, %arg1, %c1_i32 : i32
    %7 = arith.extui %6 : i1 to i32
    %c0_i32_2 = arith.constant 0 : i32
    %8 = arith.cmpi ne, %7, %c0_i32_2 : i32
    scf.if %8 {
      %c0 = arith.constant 0 : index
      %c0_5 = arith.constant 0 : index
      %12 = vector.load %arg9[%c0, %c0_5] : memref<8x128xf32, #tpu.memory_space<vmem>>, vector<8x128xf32>
      %c0_6 = arith.constant 0 : index
      %c0_7 = arith.constant 0 : index
      %13 = vector.load %arg4[%c0_6, %c0_7] : memref<1x128xf32, #tpu.memory_space<vmem>>, vector<1x128xf32>
      %14 = vector.broadcast %13 : vector<1x128xf32> to vector<8x128xf32>
      %15 = arith.addf %12, %14 : vector<8x128xf32>
      %c0_8 = arith.constant 0 : index
      %c0_9 = arith.constant 0 : index
      %16 = vector.load %arg9[%c0_8, %c0_9] : memref<8x128xf32, #tpu.memory_space<vmem>>, vector<8x128xf32>
      tpu.vector_store %arg9[%c0_8, %c0_9], %15 {strides = array<i32>} : memref<8x128xf32, #tpu.memory_space<vmem>>, vector<8x128xf32>,
      %c0_10 = arith.constant 0 : index
      %c0_11 = arith.constant 0 : index
      %17 = vector.load %arg9[%c0_10, %c0_11] : memref<8x128xf32, #tpu.memory_space<vmem>>, vector<8x128xf32>
      %c0_12 = arith.constant 0 : index
      %c0_13 = arith.constant 0 : index
      %18 = vector.load %arg7[%c0_12, %c0_13] : memref<8x128xf32, #tpu.memory_space<vmem>>, vector<8x128xf32>
      tpu.vector_store %arg7[%c0_12, %c0_13], %17 {strides = array<i32>} : memref<8x128xf32, #tpu.memory_space<vmem>>, vector<8x128xf32>,
    } else {
    }
    %c2_i32_3 = arith.constant 2 : i32
    %9 = arith.cmpi sge, %arg1, %c2_i32_3 : i32
    %10 = arith.extui %9 : i1 to i32
    %c0_i32_4 = arith.constant 0 : i32
    %11 = arith.cmpi ne, %10, %c0_i32_4 : i32
    scf.if %11 {
      %c0 = arith.constant 0 : index
      %c0_5 = arith.constant 0 : index
      %12 = vector.load %arg9[%c0, %c0_5] : memref<8x128xf32, #tpu.memory_space<vmem>>, vector<8x128xf32>
      %13 = arith.truncf %12 : vector<8x128xf32> to vector<8x128xbf16>
      %c0_6 = arith.constant 0 : index
      %c0_7 = arith.constant 0 : index
      %14 = vector.load %arg5[%c0_6, %c0_7] : memref<128x512xbf16, #tpu.memory_space<vmem>>, vector<128x512xbf16>
      %cst = arith.constant dense<0.000000e+00> : vector<8x512xf32>
      %15 = tpu.matmul %13, %14, %cst {dimension_numbers = #tpu.dot_dimension_numbers<[1], [0], [0], [1], [0, 0, 1, 1], [], []>} : vector<8x128xbf16>, vector<128x512xbf16>, vector<8x512xf32> -> vector<8x512xf32>
      %c0_8 = arith.constant 0 : index
      %c0_9 = arith.constant 0 : index
      %16 = vector.load %arg6[%c0_8, %c0_9] : memref<1x512xf32, #tpu.memory_space<vmem>>, vector<1x512xf32>
      %17 = vector.broadcast %16 : vector<1x512xf32> to vector<8x512xf32>
      %18 = arith.addf %15, %17 : vector<8x512xf32>
      %c0_10 = arith.constant 0 : index
      %c0_11 = arith.constant 0 : index
      %19 = vector.load %arg8[%c0_10, %c0_11] : memref<8x512xf32, #tpu.memory_space<vmem>>, vector<8x512xf32>
      tpu.vector_store %arg8[%c0_10, %c0_11], %18 {strides = array<i32>} : memref<8x512xf32, #tpu.memory_space<vmem>>, vector<8x512xf32>,
    } else {
    }
    return
  }
  func.func @transform_0(%arg0: i32, %arg1: i32) -> (i32, i32) {
    %c1_i32 = arith.constant 1 : i32
    %0 = arith.minsi %arg1, %c1_i32 : i32
    %c0_i32 = arith.constant 0 : i32
    return %arg0, %0 : i32, i32
  }
  func.func @transform_1(%arg0: i32, %arg1: i32) -> (i32, i32) {
    %c1_i32 = arith.constant 1 : i32
    %0 = arith.minsi %arg1, %c1_i32 : i32
    %c0_i32 = arith.constant 0 : i32
    %c0_i32_0 = arith.constant 0 : i32
    return %0, %c0_i32 : i32, i32
  }
  func.func @transform_2(%arg0: i32, %arg1: i32) -> (i32, i32) {
    %c0_i32 = arith.constant 0 : i32
    %c0_i32_0 = arith.constant 0 : i32
    %c0_i32_1 = arith.constant 0 : i32
    return %c0_i32, %c0_i32_0 : i32, i32
  }
  func.func @transform_3(%arg0: i32, %arg1: i32) -> (i32, i32) {
    %c2_i32 = arith.constant 2 : i32
    %0 = arith.subi %arg1, %c2_i32 : i32
    %c0_i32 = arith.constant 0 : i32
    %1 = arith.maxsi %0, %c0_i32 : i32
    %c0_i32_0 = arith.constant 0 : i32
    %c0_i32_1 = arith.constant 0 : i32
    return %c0_i32_0, %1 : i32, i32
  }
  func.func @transform_4(%arg0: i32, %arg1: i32) -> (i32, i32) {
    %c2_i32 = arith.constant 2 : i32
    %0 = arith.subi %arg1, %c2_i32 : i32
    %c0_i32 = arith.constant 0 : i32
    %1 = arith.maxsi %0, %c0_i32 : i32
    %c0_i32_0 = arith.constant 0 : i32
    %c0_i32_1 = arith.constant 0 : i32
    return %c0_i32_0, %1 : i32, i32
  }
  func.func @transform_5(%arg0: i32, %arg1: i32) -> (i32, i32) {
    %c0_i32 = arith.constant 0 : i32
    %c0_i32_0 = arith.constant 0 : i32
    return %arg0, %c0_i32 : i32, i32
  }
  func.func @transform_6(%arg0: i32, %arg1: i32) -> (i32, i32) {
    %c2_i32 = arith.constant 2 : i32
    %0 = arith.subi %arg1, %c2_i32 : i32
    %c0_i32 = arith.constant 0 : i32
    %1 = arith.maxsi %0, %c0_i32 : i32
    %c0_i32_0 = arith.constant 0 : i32
    return %arg0, %1 : i32, i32
  }
}

</mosaic_0001>

<llo_original>
// kernel: tpu_custom_call.1
$region0: #{tpu_custom_call.1}
  #allocation0 [shape = 'u32[]', space=smem, size = 0x4, offset = 0x4, fixed_abs, tag = 'smem constant byte address 0x4 - core index']
  #allocation1 [shape = 'u32[72,128]{1,0:T(1,128)}', space=vmem, size = 0x9000, scoped, tag = 'internal scratch']
  #allocation2 [shape = 'f32[8,128]{1,0:T(8,128)}', space=vmem, size = 0x1000, scoped, tag = 'scratch operand']
  %s0 = inlined_call_operand.hbm [shape: bf16[8,1024], index: 0, kind: input, shape index: {}]
  %s1 = inlined_call_operand.hbm [shape: bf16[1024,128], index: 1, kind: input, shape index: {}]
  %s2 = inlined_call_operand.vmem [shape: f32[1,128], index: 2, kind: input, shape index: {}]
  %s3 = inlined_call_operand.hbm [shape: bf16[128,1024], index: 3, kind: input, shape index: {}]
  %s4 = inlined_call_operand.hbm [shape: f32[1,1024], index: 4, kind: input, shape index: {}]
  %s5 = inlined_call_operand.hbm [shape: f32[8,128], index: 5, kind: output, shape index: {0}]
  %s6 = inlined_call_operand.hbm [shape: f32[8,1024], index: 6, kind: output, shape index: {1}]
  %7 = xla_tuple %s5, %s6
  %s8 = sld [smem:[#allocation0]]
  $region93: #{tpu_custom_call.1} parent=0
    _
  %s10 = ssub.s32 1, %s8
  %s11 = scalar_select 0, %s10, %s8
  $region1: #{tpu_custom_call.1} parent=0
    #allocation3 [shape = 'u8[16384]{0}', space=vmem, size = 0x4000, scoped, tag = 'input window, operand 0']
    #allocation4 [shape = 's32[2]{0}', space=sflag, size = 0x8, scoped, tag = 'scoped memory for tpu_custom_call.1']
    #allocation5 [shape = 's32[2]{0}', space=sflag, size = 0x8, scoped, tag = 'scoped memory for tpu_custom_call.1']
    #allocation6 [shape = 'u8[262144]{0}', space=vmem, size = 0x40000, scoped, tag = 'input window, operand 1']
    #allocation7 [shape = 's32[2]{0}', space=sflag, size = 0x8, scoped, tag = 'scoped memory for tpu_custom_call.1']
    #allocation8 [shape = 'u8[262144]{0}', space=vmem, size = 0x40000, scoped, tag = 'input window, operand 3']
    #allocation9 [shape = 'u8[4096]{0}', space=vmem, size = 0x1000, scoped, tag = 'input window, operand 4']
    #allocation10 [shape = 's32[2]{0}', space=sflag, size = 0x8, scoped, tag = 'scoped memory for tpu_custom_call.1']
    #allocation11 [shape = 'u8[4096]{0}', space=vmem, size = 0x1000, scoped, tag = 'output window, operand 0, single buffered']
    #allocation12 [shape = 'u8[32768]{0}', space=vmem, size = 0x8000, scoped, tag = 'output window, operand 1']
    #allocation13 [shape = 's32[2]{0}', space=sflag, size = 0x8, scoped, tag = 'scoped memory for tpu_custom_call.1']
    %12 = vsyncpa [#allocation4], 0
    %s13 = scalar_lea.sflag [#allocation4], 1
    %14 = vsyncpa %s13, 0
    %15 = vsyncpa [#allocation7], 0
    %s16 = scalar_lea.sflag [#allocation7], 1
    %17 = vsyncpa %s16, 0
    %18 = vsyncpa [#allocation10], 0
    %s19 = scalar_lea.sflag [#allocation10], 1
    %20 = vsyncpa %s19, 0
    %21 = vsyncpa [#allocation5], 0
    %22 = vsyncpa [#allocation13], 0
    %s23 = scalar_lea.sflag [#allocation13], 1
    %24 = vsyncpa %s23, 0
    loop: start=0, step=1, limit=6
    $region2: #{tpu_custom_call.1} parent=1 // loop_pre_header
      _
    $region3: #{tpu_custom_call.1} parent=1 // loop_header
      %s26 = sphi 0, %s30
      %p27 = scmp.ge.s32.totalorder %s26, 6
      %s33 = sphi 0, %s45
      %s34 = sphi 0, %s41
      %s35 = sphi 0, %s33
      %s36 = sphi 0, %s34
      %s37 = sphi 0, %s35
      %s38 = sphi 0, %s36
      %s54 = sphi 0, %s56
      %s57 = sphi 0, %s54
      %s58 = sphi 0, %s57
      %s74 = sphi 0, %s58
      %s84 = sphi 0, %s86
      %s87 = sphi 0, %s84
      %s88 = sphi 0, %s87
      %s104 = sphi 0, %s88
      %s108 = sphi 0, %s108
      %s110 = sphi 0, %s108
      %s111 = sphi 0, %s110
      %s125 = sphi 0, %s111
      %s137 = sphi 0, %s139
      %s140 = sphi 0, %s137
      %s141 = sphi 0, %s140
      %s157 = sphi 0, %s141
      %s169 = sphi 0, %s171
      %s172 = sphi 0, %s169
      %s173 = sphi 0, %s172
      %s189 = sphi 0, %s173
      %s195 = sphi 0, %s197
      %s198 = sphi 0, %s195
      %s199 = sphi 0, %s198
      %s215 = sphi 0, %s199
      %s229 = sphi 0, %s231
      %s232 = sphi 0, %s229
      %s233 = sphi 0, %s232
      %s249 = sphi 0, %s233
    $region4: #{tpu_custom_call.1} parent=1 // loop_header_branch
      %29 = sbr.rel (%p27) target = $region8
    $region5: #{tpu_custom_call.1} parent=1 // loop_body
      %s31 = ssub.s32 %s26, 1
      %s32 = ssub.s32 %s26, 2
      %s39 = sadd.s32 1, %s34
      %p40 = scmp.ge.s32.totalorder %s39, 4
      %s41 = scalar_select %p40, 0, %s39
      %s42 = sadd.s32 1, %s33
      %s43 = scalar_select %p40, %s42, %s33
      %p44 = scmp.ge.s32.totalorder %s43, 1
      %s45 = scalar_select %p44, 0, %s43
      %p46 = scmp.lt.s32.totalorder %s34, 1
      %s47 = scalar_select %p46, %s34, 1
      %p48 = scmp.lt.s32.totalorder %s41, 1
      %s49 = scalar_select %p48, %s41, 1
      %s50 = ssub.s32 %s33, %s45
      %s51 = ssub.s32 %s47, %s49
      %s52 = sor.u32 %s50, %s51
      %p53 = scmp.eq.s32.totalorder %s52, 0
      %s55 = sadd.s32 %s54, 1
      %s56 = scalar_select %p53, %s54, %s55
      %p59 = pneg %p53
      %p60 = scmp.eq.s32.totalorder %s26, 3
      %p61 = por %p59, %p60
      %p62 = scmp.ne.s32.totalorder %s54, %s57
      %p63 = scmp.eq.s32.totalorder %s26, 0
      %p64 = por %p62, %p63
      %p65 = scmp.ne.s32.totalorder %s54, %s57
      %p66 = scmp.eq.s32.totalorder %s31, 3
      %p67 = por %p65, %p66
      %p68 = scmp.ne.s32.totalorder %s57, %s58
      %p69 = scmp.eq.s32.totalorder %s31, 0
      %p70 = por %p68, %p69
      %p71 = scmp.ne.s32.totalorder %s57, %s58
      %p72 = scmp.eq.s32.totalorder %s32, 3
      %p73 = por %p71, %p72
      %p75 = scmp.ne.s32.totalorder %s58, %s74
      %p76 = scmp.eq.s32.totalorder %s32, 0
      %p77 = por %p75, %p76
      %p78 = scmp.lt.s32.totalorder %s34, 1
      %s79 = scalar_select %p78, %s34, 1
      %p80 = scmp.lt.s32.totalorder %s41, 1
      %s81 = scalar_select %p80, %s41, 1
      %s82 = ssub.s32 %s79, %s81
      %p83 = scmp.eq.s32.totalorder %s82, 0
      %s85 = sadd.s32 %s84, 1
      %s86 = scalar_select %p83, %s84, %s85
      %p89 = pneg %p83
      %p90 = scmp.eq.s32.totalorder %s26, 3
      %p91 = por %p89, %p90
      %p92 = scmp.ne.s32.totalorder %s84, %s87
      %p93 = scmp.eq.s32.totalorder %s26, 0
      %p94 = por %p92, %p93
      %p95 = scmp.ne.s32.totalorder %s84, %s87
      %p96 = scmp.eq.s32.totalorder %s31, 3
      %p97 = por %p95, %p96
      %p98 = scmp.ne.s32.totalorder %s87, %s88
      %p99 = scmp.eq.s32.totalorder %s31, 0
      %p100 = por %p98, %p99
      %p101 = scmp.ne.s32.totalorder %s87, %s88
      %p102 = scmp.eq.s32.totalorder %s32, 3
      %p103 = por %p101, %p102
      %p105 = scmp.ne.s32.totalorder %s88, %s104
      %p106 = scmp.eq.s32.totalorder %s32, 0
      %p107 = por %p105, %p106
      %s109 = sadd.s32 %s108, 1
      %p112 = scmp.eq.s32.totalorder %s26, 3
      %p113 = scmp.ne.s32.totalorder %s108, %s110
      %p114 = scmp.eq.s32.totalorder %s26, 0
      %p115 = por %p113, %p114
      %p116 = scmp.ne.s32.totalorder %s108, %s110
      %p117 = scmp.eq.s32.totalorder %s31, 3
      %p118 = por %p116, %p117
      %p119 = scmp.ne.s32.totalorder %s110, %s111
      %p120 = scmp.eq.s32.totalorder %s31, 0
      %p121 = por %p119, %p120
      %p122 = scmp.ne.s32.totalorder %s110, %s111
      %p123 = scmp.eq.s32.totalorder %s32, 3
      %p124 = por %p122, %p123
      %p126 = scmp.ne.s32.totalorder %s111, %s125
      %p127 = scmp.eq.s32.totalorder %s32, 0
      %p128 = por %p126, %p127
      %s129 = ssub.s32 %s34, 2
      %p130 = scmp.gt.s32.totalorder %s129, 0
      %s131 = scalar_select %p130, %s129, 0
      %s132 = ssub.s32 %s41, 2
      %p133 = scmp.gt.s32.totalorder %s132, 0
      %s134 = scalar_select %p133, %s132, 0
      %s135 = ssub.s32 %s131, %s134
      %p136 = scmp.eq.s32.totalorder %s135, 0
      %s138 = sadd.s32 %s137, 1
      %s139 = scalar_select %p136, %s137, %s138
      %p142 = pneg %p136
      %p143 = scmp.eq.s32.totalorder %s26, 3
      %p144 = por %p142, %p143
      %p145 = scmp.ne.s32.totalorder %s137, %s140
      %p146 = scmp.eq.s32.totalorder %s26, 0
      %p147 = por %p145, %p146
      %p148 = scmp.ne.s32.totalorder %s137, %s140
      %p149 = scmp.eq.s32.totalorder %s31, 3
      %p150 = por %p148, %p149
      %p151 = scmp.ne.s32.totalorder %s140, %s141
      %p152 = scmp.eq.s32.totalorder %s31, 0
      %p153 = por %p151, %p152
      %p154 = scmp.ne.s32.totalorder %s140, %s141
      %p155 = scmp.eq.s32.totalorder %s32, 3
      %p156 = por %p154, %p155
      %p158 = scmp.ne.s32.totalorder %s141, %s157
      %p159 = scmp.eq.s32.totalorder %s32, 0
      %p160 = por %p158, %p159
      %s161 = ssub.s32 %s34, 2
      %p162 = scmp.gt.s32.totalorder %s161, 0
      %s163 = scalar_select %p162, %s161, 0
      %s164 = ssub.s32 %s41, 2
      %p165 = scmp.gt.s32.totalorder %s164, 0
      %s166 = scalar_select %p165, %s164, 0
      %s167 = ssub.s32 %s163, %s166
      %p168 = scmp.eq.s32.totalorder %s167, 0
      %s170 = sadd.s32 %s169, 1
      %s171 = scalar_select %p168, %s169, %s170
      %p174 = pneg %p168
      %p175 = scmp.eq.s32.totalorder %s26, 3
      %p176 = por %p174, %p175
      %p177 = scmp.ne.s32.totalorder %s169, %s172
      %p178 = scmp.eq.s32.totalorder %s26, 0
      %p179 = por %p177, %p178
      %p180 = scmp.ne.s32.totalorder %s169, %s172
      %p181 = scmp.eq.s32.totalorder %s31, 3
      %p182 = por %p180, %p181
      %p183 = scmp.ne.s32.totalorder %s172, %s173
      %p184 = scmp.eq.s32.totalorder %s31, 0
      %p185 = por %p183, %p184
      %p186 = scmp.ne.s32.totalorder %s172, %s173
      %p187 = scmp.eq.s32.totalorder %s32, 3
      %p188 = por %p186, %p187
      %p190 = scmp.ne.s32.totalorder %s173, %s189
      %p191 = scmp.eq.s32.totalorder %s32, 0
      %p192 = por %p190, %p191
      %s193 = ssub.s32 %s33, %s45
      %p194 = scmp.eq.s32.totalorder %s193, 0
      %s196 = sadd.s32 %s195, 1
      %s197 = scalar_select %p194, %s195, %s196
      %p200 = pneg %p194
      %p201 = scmp.eq.s32.totalorder %s26, 3
      %p202 = por %p200, %p201
      %p203 = scmp.ne.s32.totalorder %s195, %s198
      %p204 = scmp.eq.s32.totalorder %s26, 0
      %p205 = por %p203, %p204
      %p206 = scmp.ne.s32.totalorder %s195, %s198
      %p207 = scmp.eq.s32.totalorder %s31, 3
      %p208 = por %p206, %p207
      %p209 = scmp.ne.s32.totalorder %s198, %s199
      %p210 = scmp.eq.s32.totalorder %s31, 0
      %p211 = por %p209, %p210
      %p212 = scmp.ne.s32.totalorder %s198, %s199
      %p213 = scmp.eq.s32.totalorder %s32, 3
      %p214 = por %p212, %p213
      %p216 = scmp.ne.s32.totalorder %s199, %s215
      %p217 = scmp.eq.s32.totalorder %s32, 0
      %p218 = por %p216, %p217
      %s219 = ssub.s32 %s34, 2
      %p220 = scmp.gt.s32.totalorder %s219, 0
      %s221 = scalar_select %p220, %s219, 0
      %s222 = ssub.s32 %s41, 2
      %p223 = scmp.gt.s32.totalorder %s222, 0
      %s224 = scalar_select %p223, %s222, 0
      %s225 = ssub.s32 %s33, %s45
      %s226 = ssub.s32 %s221, %s224
      %s227 = sor.u32 %s225, %s226
      %p228 = scmp.eq.s32.totalorder %s227, 0
      %s230 = sadd.s32 %s229, 1
      %s231 = scalar_select %p228, %s229, %s230
      %p234 = pneg %p228
      %p235 = scmp.eq.s32.totalorder %s26, 3
      %p236 = por %p234, %p235
      %p237 = scmp.ne.s32.totalorder %s229, %s232
      %p238 = scmp.eq.s32.totalorder %s26, 0
      %p239 = por %p237, %p238
      %p240 = scmp.ne.s32.totalorder %s229, %s232
      %p241 = scmp.eq.s32.totalorder %s31, 3
      %p242 = por %p240, %p241
      %p243 = scmp.ne.s32.totalorder %s232, %s233
      %p244 = scmp.eq.s32.totalorder %s31, 0
      %p245 = por %p243, %p244
      %p246 = scmp.ne.s32.totalorder %s232, %s233
      %p247 = scmp.eq.s32.totalorder %s32, 3
      %p248 = por %p246, %p247
      %p250 = scmp.ne.s32.totalorder %s233, %s249
      %p251 = scmp.eq.s32.totalorder %s32, 0
      %p252 = por %p250, %p251
      %p253 = scmp.le.s32.totalorder 1, %s26
      %p254 = scmp.lt.s32.totalorder %s26, 5
      %p255 = pnand %p253, %p254
      %p256 = pneg %p255
      // Predicated region
      $region9: #{tpu_custom_call.1} parent=5 // pred_check
        _
      $region10: #{tpu_custom_call.1} parent=5 // pred_check_branch
        %258 = sbr.rel (%p255) target = $region12
      $region11: #{tpu_custom_call.1} parent=5 // pred_region
        %s259 = ssub.s32 %s26, 1
        // Predicated region
        $region13: #{tpu_custom_call.1} parent=11 // pred_check
          %p260 = pneg %p121
        $region14: #{tpu_custom_call.1} parent=11 // pred_check_branch
          %262 = sbr.rel (%p260) target = $region16
        $region15: #{tpu_custom_call.1} parent=11 // pred_region
          _
        $region16: #{tpu_custom_call.1} parent=11 // pred_fallthru
          _
      $region12: #{tpu_custom_call.1} parent=5 // pred_fallthru
        _
      %p263 = scmp.lt.s32.totalorder %s26, 4
      // Predicated region
      $region17: #{tpu_custom_call.1} parent=5 // pred_check
        %p264 = pneg %p263
      $region18: #{tpu_custom_call.1} parent=5 // pred_check_branch
        %266 = sbr.rel (%p264) target = $region20
      $region19: #{tpu_custom_call.1} parent=5 // pred_region
        // Predicated region
        $region21: #{tpu_custom_call.1} parent=19 // pred_check
          %p267 = pneg %p64
        $region22: #{tpu_custom_call.1} parent=19 // pred_check_branch
          %269 = sbr.rel (%p267) target = $region24
        $region23: #{tpu_custom_call.1} parent=19 // pred_region
          %s270 = sand.u32 %s54, 1
          %s271 = scalar_lea.sflag [#allocation4], %s270
          %s272 = sand.u32 %s54, 1
          %s273 = smul.addr %s272, 16
          %s274 = scalar_lea.vmem [#allocation3], %s273
          %p275 = scmp.lt.s32.totalorder %s34, 1
          %s276 = scalar_select %p275, %s34, 1
          %s277 = smul.u32 4, %s276
          %279 = vsyncadd %s271, 0
          %s280 = smul.addr %s33, 8
          %s281 = sadd.s32 %s277, %s280
          %s282 = smul.addr %s281, 4
          %s283 = scalar_lea.hbm %s0, %s282
          %s285 = sshll.u32 %s283, 4
          %s286 = int_to_ptr.hbm [resolvable:$true] %s285
          %s287 = sshll.u32 %s274, 4
          %s288 = int_to_ptr.vmem [resolvable:$true] %s287
          %290 = dma.hbm_to_vmem [thread:$0]  %s286, 256, %s288, %s271
        $region24: #{tpu_custom_call.1} parent=19 // pred_fallthru
          _
        // Predicated region
        $region25: #{tpu_custom_call.1} parent=19 // pred_check
          %p291 = pneg %p94
        $region26: #{tpu_custom_call.1} parent=19 // pred_check_branch
          %293 = sbr.rel (%p291) target = $region28
        $region27: #{tpu_custom_call.1} parent=19 // pred_region
          %s294 = sand.u32 %s26, 1
          %s295 = scalar_lea.sflag [#allocation7], %s294
          %s296 = sand.u32 %s84, 1
          %s297 = smul.addr %s296, 256
          %s298 = scalar_lea.vmem [#allocation6], %s297
          %p299 = scmp.lt.s32.totalorder %s34, 1
          %s300 = scalar_select %p299, %s34, 1
          %s301 = smul.u32 64, %s300
          %303 = vsyncadd %s295, 0
          %s304 = smul.addr %s301, 4
          %s305 = scalar_lea.hbm %s1, %s304
          %s306 = sshll.u32 %s305, 4
          %s307 = int_to_ptr.hbm [resolvable:$true] %s306
          %s308 = sshll.u32 %s298, 4
          %s309 = int_to_ptr.vmem [resolvable:$true] %s308
          %314 = dma.hbm_to_vmem [thread:$0]  %s307, 4096, %s309, %s295, 64, 64, 4
        $region28: #{tpu_custom_call.1} parent=19 // pred_fallthru
          _
        // Predicated region
        $region29: #{tpu_custom_call.1} parent=19 // pred_check
          %p315 = pneg %p147
        $region30: #{tpu_custom_call.1} parent=19 // pred_check_branch
          %317 = sbr.rel (%p315) target = $region32
        $region31: #{tpu_custom_call.1} parent=19 // pred_region
          %s318 = sand.u32 %s26, 1
          %s319 = scalar_lea.sflag [#allocation7], %s318
          %s320 = sand.u32 %s137, 1
          %s321 = smul.addr %s320, 256
          %s322 = scalar_lea.vmem [#allocation8], %s321
          %s323 = ssub.s32 %s34, 2
          %p324 = scmp.gt.s32.totalorder %s323, 0
          %s325 = scalar_select %p324, %s323, 0
          %s326 = smul.u32 4, %s325
          %328 = vsyncadd %s319, 0
          %s329 = smul.addr %s326, 4
          %s330 = scalar_lea.hbm %s3, %s329
          %s331 = sshll.u32 %s330, 4
          %s332 = int_to_ptr.hbm [resolvable:$true] %s331
          %s333 = sshll.u32 %s322, 4
          %s334 = int_to_ptr.vmem [resolvable:$true] %s333
          %339 = dma.hbm_to_vmem [thread:$0]  %s332, 4096, %s334, %s319, 512, 256, 16
        $region32: #{tpu_custom_call.1} parent=19 // pred_fallthru
          _
        // Predicated region
        $region33: #{tpu_custom_call.1} parent=19 // pred_check
          %p340 = pneg %p179
        $region34: #{tpu_custom_call.1} parent=19 // pred_check_branch
          %342 = sbr.rel (%p340) target = $region36
        $region35: #{tpu_custom_call.1} parent=19 // pred_region
          %s343 = sand.u32 %s169, 1
          %s344 = scalar_lea.sflag [#allocation10], %s343
          %s345 = sand.u32 %s169, 1
          %s346 = smul.addr %s345, 4
          %s347 = scalar_lea.vmem [#allocation9], %s346
          %s348 = ssub.s32 %s34, 2
          %p349 = scmp.gt.s32.totalorder %s348, 0
          %s350 = scalar_select %p349, %s348, 0
          %s351 = smul.u32 4, %s350
          %353 = vsyncadd %s344, 0
          %s354 = scalar_lea.hbm %s4, %s351
          %s356 = sshll.u32 %s354, 4
          %s357 = int_to_ptr.hbm [resolvable:$true] %s356
          %s358 = sshll.u32 %s347, 4
          %s359 = int_to_ptr.vmem [resolvable:$true] %s358
          %361 = dma.hbm_to_vmem [thread:$0]  %s357, 64, %s359, %s344
        $region36: #{tpu_custom_call.1} parent=19 // pred_fallthru
          _
      $region20: #{tpu_custom_call.1} parent=5 // pred_fallthru
        _
      %p362 = scmp.le.s32.totalorder 1, %s26
      %p363 = scmp.lt.s32.totalorder %s26, 5
      %p364 = pnand %p362, %p363
      %p365 = pneg %p364
      // Predicated region
      $region37: #{tpu_custom_call.1} parent=5 // pred_check
        _
      $region38: #{tpu_custom_call.1} parent=5 // pred_check_branch
        %367 = sbr.rel (%p364) target = $region40
      $region39: #{tpu_custom_call.1} parent=5 // pred_region
        %s368 = ssub.s32 %s26, 1
        %s369 = sand.u32 %s57, 1
        %s370 = scalar_lea.sflag [#allocation4], %s369
        %s371 = sand.u32 %s57, 1
        %s372 = smul.addr %s371, 16
        %s373 = scalar_lea.vmem [#allocation3], %s372
        // Predicated region
        $region41: #{tpu_custom_call.1} parent=39 // pred_check
          %p374 = pneg %p70
        $region42: #{tpu_custom_call.1} parent=39 // pred_check_branch
          %376 = sbr.rel (%p374) target = $region44
        $region43: #{tpu_custom_call.1} parent=39 // pred_region
          %378 = dma.done %s370, 256
        $region44: #{tpu_custom_call.1} parent=39 // pred_fallthru
          _
        %s379 = sand.u32 %s31, 1
        %s380 = scalar_lea.sflag [#allocation7], %s379
        %s381 = sand.u32 %s87, 1
        %s382 = smul.addr %s381, 256
        %s383 = scalar_lea.vmem [#allocation6], %s382
        // Predicated region
        $region45: #{tpu_custom_call.1} parent=39 // pred_check
          %p384 = pneg %p100
        $region46: #{tpu_custom_call.1} parent=39 // pred_check_branch
          %386 = sbr.rel (%p384) target = $region48
        $region47: #{tpu_custom_call.1} parent=39 // pred_region
          %388 = dma.done %s380, 4096
        $region48: #{tpu_custom_call.1} parent=39 // pred_fallthru
          _
        %s389 = sand.u32 %s31, 1
        %s390 = scalar_lea.sflag [#allocation7], %s389
        %s391 = sand.u32 %s140, 1
        %s392 = smul.addr %s391, 256
        %s393 = scalar_lea.vmem [#allocation8], %s392
        // Predicated region
        $region49: #{tpu_custom_call.1} parent=39 // pred_check
          %p394 = pneg %p153
        $region50: #{tpu_custom_call.1} parent=39 // pred_check_branch
          %396 = sbr.rel (%p394) target = $region52
        $region51: #{tpu_custom_call.1} parent=39 // pred_region
          %398 = dma.done %s390, 4096
        $region52: #{tpu_custom_call.1} parent=39 // pred_fallthru
          _
        %s399 = sand.u32 %s172, 1
        %s400 = scalar_lea.sflag [#allocation10], %s399
        %s401 = sand.u32 %s172, 1
        %s402 = smul.addr %s401, 4
        %s403 = scalar_lea.vmem [#allocation9], %s402
        // Predicated region
        $region53: #{tpu_custom_call.1} parent=39 // pred_check
          %p404 = pneg %p185
        $region54: #{tpu_custom_call.1} parent=39 // pred_check_branch
          %406 = sbr.rel (%p404) target = $region56
        $region55: #{tpu_custom_call.1} parent=39 // pred_region
          %408 = dma.done %s400, 64
        $region56: #{tpu_custom_call.1} parent=39 // pred_fallthru
          _
        %s409 = sand.u32 %s57, 1
        %s410 = scalar_lea.sflag [#allocation4], %s409
        %s411 = sand.u32 %s57, 1
        %s412 = smul.addr %s411, 16
        %s413 = scalar_lea.vmem [#allocation3], %s412
        %p414 = pneg %p70
        %p415 = pneg %p67
        %s416 = sand.u32 %s31, 1
        %s417 = scalar_lea.sflag [#allocation7], %s416
        %s418 = sand.u32 %s87, 1
        %s419 = smul.addr %s418, 256
        %s420 = scalar_lea.vmem [#allocation6], %s419
        %p421 = pneg %p100
        %p422 = pneg %p97
        %p423 = pneg %p121
        %p424 = pneg %p118
        %s425 = sand.u32 %s31, 1
        %s426 = scalar_lea.sflag [#allocation7], %s425
        %s427 = sand.u32 %s140, 1
        %s428 = smul.addr %s427, 256
        %s429 = scalar_lea.vmem [#allocation8], %s428
        %p430 = pneg %p153
        %p431 = pneg %p150
        %s432 = sand.u32 %s172, 1
        %s433 = scalar_lea.sflag [#allocation10], %s432
        %s434 = sand.u32 %s172, 1
        %s435 = smul.addr %s434, 4
        %s436 = scalar_lea.vmem [#allocation9], %s435
        %p437 = pneg %p185
        %p438 = pneg %p182
        %p439 = pneg %p211
        %p440 = pneg %p208
        %p441 = pneg %p245
        %p442 = pneg %p242
        %s443 = sand.u32 %s232, 1
        %s444 = scalar_lea.sflag [#allocation13], %s443
        %s445 = sand.u32 %s232, 1
        %s446 = smul.addr %s445, 32
        %s447 = scalar_lea.vmem [#allocation12], %s446
        %p448 = scmp.lt.s32.totalorder %s36, 1
        %s449 = scalar_select %p448, %s36, 1
        %s450 = smul.u32 4, %s449
        %p451 = scmp.lt.s32.totalorder %s36, 1
        %s452 = scalar_select %p451, %s36, 1
        %s453 = smul.u32 64, %s452
        %s454 = ssub.s32 %s36, 2
        %p455 = scmp.gt.s32.totalorder %s454, 0
        %s456 = scalar_select %p455, %s454, 0
        %s457 = smul.u32 4, %s456
        %s458 = ssub.s32 %s36, 2
        %p459 = scmp.gt.s32.totalorder %s458, 0
        %s460 = scalar_select %p459, %s458, 0
        %s461 = smul.u32 4, %s460
        %s462 = ssub.s32 %s36, 2
        %p463 = scmp.gt.s32.totalorder %s462, 0
        %s464 = scalar_select %p463, %s462, 0
        %s465 = smul.u32 4, %s464
        %p466 = scmp.eq.s32.totalorder %s36, 0
        // Predicated region
        $region57: #{tpu_custom_call.1} parent=39 // pred_check
          %p467 = pneg %p466
        $region58: #{tpu_custom_call.1} parent=39 // pred_check_branch
          %469 = sbr.rel (%p467) target = $region60
        $region59: #{tpu_custom_call.1} parent=39 // pred_region
          %470 = vst [vmem:[#allocation2] sm:$0xff] 0.0
        $region60: #{tpu_custom_call.1} parent=39 // pred_fallthru
          _
        %p471 = scmp.lt.s32.totalorder %s36, 2
        // Predicated region
        $region61: #{tpu_custom_call.1} parent=39 // pred_check
          %p472 = pneg %p471
        $region62: #{tpu_custom_call.1} parent=39 // pred_check_branch
          %474 = sbr.rel (%p472) target = $region64
        $region63: #{tpu_custom_call.1} parent=39 // pred_region
          %v475 = vld [vmem:[#allocation2] sm:$0xff]
          %v476 = vld [vmem:[%s373] sm:$0xff]
          %v477 = vld [vmem:[%s373 + $0x8] sm:$0xff]
          %v478 = vld [vmem:[%s383] sm:$0xf]
          %v479 = vld [vmem:[%s383 + $0x4] sm:$0xf]
          %v480 = vld [vmem:[%s383 + $0x8] sm:$0xf]
          %v481 = vld [vmem:[%s383 + $0xc] sm:$0xf]
          %v482 = vld [vmem:[%s383 + $0x10] sm:$0xf]
          %v483 = vld [vmem:[%s383 + $0x14] sm:$0xf]
          %v484 = vld [vmem:[%s383 + $0x18] sm:$0xf]
          %v485 = vld [vmem:[%s383 + $0x1c] sm:$0xf]
          %v486 = vld [vmem:[%s383 + $0x20] sm:$0xf]
          %v487 = vld [vmem:[%s383 + $0x24] sm:$0xf]
          %v488 = vld [vmem:[%s383 + $0x28] sm:$0xf]
          %v489 = vld [vmem:[%s383 + $0x2c] sm:$0xf]
          %v490 = vld [vmem:[%s383 + $0x30] sm:$0xf]
          %v491 = vld [vmem:[%s383 + $0x34] sm:$0xf]
          %v492 = vld [vmem:[%s383 + $0x38] sm:$0xf]
          %v493 = vld [vmem:[%s383 + $0x3c] sm:$0xf]
          %v494 = vld [vmem:[%s383 + $0x40] sm:$0xf]
          %v495 = vld [vmem:[%s383 + $0x44] sm:$0xf]
          %v496 = vld [vmem:[%s383 + $0x48] sm:$0xf]
          %v497 = vld [vmem:[%s383 + $0x4c] sm:$0xf]
          %v498 = vld [vmem:[%s383 + $0x50] sm:$0xf]
          %v499 = vld [vmem:[%s383 + $0x54] sm:$0xf]
          %v500 = vld [vmem:[%s383 + $0x58] sm:$0xf]
          %v501 = vld [vmem:[%s383 + $0x5c] sm:$0xf]
          %v502 = vld [vmem:[%s383 + $0x60] sm:$0xf]
          %v503 = vld [vmem:[%s383 + $0x64] sm:$0xf]
          %v504 = vld [vmem:[%s383 + $0x68] sm:$0xf]
          %v505 = vld [vmem:[%s383 + $0x6c] sm:$0xf]
          %v506 = vld [vmem:[%s383 + $0x70] sm:$0xf]
          %v507 = vld [vmem:[%s383 + $0x74] sm:$0xf]
          %v508 = vld [vmem:[%s383 + $0x78] sm:$0xf]
          %v509 = vld [vmem:[%s383 + $0x7c] sm:$0xf]
          %v510 = vld [vmem:[%s383 + $0x80] sm:$0xf]
          %v511 = vld [vmem:[%s383 + $0x84] sm:$0xf]
          %v512 = vld [vmem:[%s383 + $0x88] sm:$0xf]
          %v513 = vld [vmem:[%s383 + $0x8c] sm:$0xf]
          %v514 = vld [vmem:[%s383 + $0x90] sm:$0xf]
          %v515 = vld [vmem:[%s383 + $0x94] sm:$0xf]
          %v516 = vld [vmem:[%s383 + $0x98] sm:$0xf]
          %v517 = vld [vmem:[%s383 + $0x9c] sm:$0xf]
          %v518 = vld [vmem:[%s383 + $0xa0] sm:$0xf]
          %v519 = vld [vmem:[%s383 + $0xa4] sm:$0xf]
          %v520 = vld [vmem:[%s383 + $0xa8] sm:$0xf]
          %v521 = vld [vmem:[%s383 + $0xac] sm:$0xf]
          %v522 = vld [vmem:[%s383 + $0xb0] sm:$0xf]
          %v523 = vld [vmem:[%s383 + $0xb4] sm:$0xf]
          %v524 = vld [vmem:[%s383 + $0xb8] sm:$0xf]
          %v525 = vld [vmem:[%s383 + $0xbc] sm:$0xf]
          %v526 = vld [vmem:[%s383 + $0xc0] sm:$0xf]
          %v527 = vld [vmem:[%s383 + $0xc4] sm:$0xf]
          %v528 = vld [vmem:[%s383 + $0xc8] sm:$0xf]
          %v529 = vld [vmem:[%s383 + $0xcc] sm:$0xf]
          %v530 = vld [vmem:[%s383 + $0xd0] sm:$0xf]
          %v531 = vld [vmem:[%s383 + $0xd4] sm:$0xf]
          %v532 = vld [vmem:[%s383 + $0xd8] sm:$0xf]
          %v533 = vld [vmem:[%s383 + $0xdc] sm:$0xf]
          %v534 = vld [vmem:[%s383 + $0xe0] sm:$0xf]
          %v535 = vld [vmem:[%s383 + $0xe4] sm:$0xf]
          %v536 = vld [vmem:[%s383 + $0xe8] sm:$0xf]
          %v537 = vld [vmem:[%s383 + $0xec] sm:$0xf]
          %v538 = vld [vmem:[%s383 + $0xf0] sm:$0xf]
          %v539 = vld [vmem:[%s383 + $0xf4] sm:$0xf]
          %v540 = vld [vmem:[%s383 + $0xf8] sm:$0xf]
          %v541 = vld [vmem:[%s383 + $0xfc] sm:$0xf]
          %v544 = vunpack.c.l.b16 %v476
          %v545 = vunpack.c.h.b16 %v476
          %v546 = vunpack.c.l.b16 %v477
          %v547 = vunpack.c.h.b16 %v477
          %v548 = vpack.c.b16 %v544, %v544
          %v549 = vpack.c.b16 %v545, %v545
          %v550 = vpack.c.b16 %v546, %v546
          %v551 = vpack.c.b16 %v547, %v547
          %v620 = vunpack.c.l.b16 %v478
          %v621 = vunpack.c.l.b16 %v479
          %v622 = vunpack.c.l.b16 %v480
          %v623 = vunpack.c.l.b16 %v481
          %v624 = vunpack.c.l.b16 %v482
          %v625 = vunpack.c.l.b16 %v483
          %v626 = vunpack.c.l.b16 %v484
          %v627 = vunpack.c.l.b16 %v485
          %v628 = vunpack.c.l.b16 %v486
          %v629 = vunpack.c.l.b16 %v487
          %v630 = vunpack.c.l.b16 %v488
          %v631 = vunpack.c.l.b16 %v489
          %v632 = vunpack.c.l.b16 %v490
          %v633 = vunpack.c.l.b16 %v491
          %v634 = vunpack.c.l.b16 %v492
          %v635 = vunpack.c.l.b16 %v493
          %v636 = vunpack.c.l.b16 %v494
          %v637 = vunpack.c.l.b16 %v495
          %v638 = vunpack.c.l.b16 %v496
          %v639 = vunpack.c.l.b16 %v497
          %v640 = vunpack.c.l.b16 %v498
          %v641 = vunpack.c.l.b16 %v499
          %v642 = vunpack.c.l.b16 %v500
          %v643 = vunpack.c.l.b16 %v501
          %v644 = vunpack.c.l.b16 %v502
          %v645 = vunpack.c.l.b16 %v503
          %v646 = vunpack.c.l.b16 %v504
          %v647 = vunpack.c.l.b16 %v505
          %v648 = vunpack.c.l.b16 %v506
          %v649 = vunpack.c.l.b16 %v507
          %v650 = vunpack.c.l.b16 %v508
          %v651 = vunpack.c.l.b16 %v509
          %v652 = vunpack.c.l.b16 %v510
          %v653 = vunpack.c.l.b16 %v511
          %v654 = vunpack.c.l.b16 %v512
          %v655 = vunpack.c.l.b16 %v513
          %v656 = vunpack.c.l.b16 %v514
          %v657 = vunpack.c.l.b16 %v515
          %v658 = vunpack.c.l.b16 %v516
          %v659 = vunpack.c.l.b16 %v517
          %v660 = vunpack.c.l.b16 %v518
          %v661 = vunpack.c.l.b16 %v519
          %v662 = vunpack.c.l.b16 %v520
          %v663 = vunpack.c.l.b16 %v521
          %v664 = vunpack.c.l.b16 %v522
          %v665 = vunpack.c.l.b16 %v523
          %v666 = vunpack.c.l.b16 %v524
          %v667 = vunpack.c.l.b16 %v525
          %v668 = vunpack.c.l.b16 %v526
          %v669 = vunpack.c.l.b16 %v527
          %v670 = vunpack.c.l.b16 %v528
          %v671 = vunpack.c.l.b16 %v529
          %v672 = vunpack.c.l.b16 %v530
          %v673 = vunpack.c.l.b16 %v531
          %v674 = vunpack.c.l.b16 %v532
          %v675 = vunpack.c.l.b16 %v533
          %v676 = vunpack.c.l.b16 %v534
          %v677 = vunpack.c.l.b16 %v535
          %v678 = vunpack.c.l.b16 %v536
          %v679 = vunpack.c.l.b16 %v537
          %v680 = vunpack.c.l.b16 %v538
          %v681 = vunpack.c.l.b16 %v539
          %v682 = vunpack.c.l.b16 %v540
          %v683 = vunpack.c.l.b16 %v541
          %v684 = vpack.c.b16 %v621, %v620
          %v685 = vpack.c.b16 %v623, %v622
          %v686 = vpack.c.b16 %v625, %v624
          %v687 = vpack.c.b16 %v627, %v626
          %v688 = vpack.c.b16 %v629, %v628
          %v689 = vpack.c.b16 %v631, %v630
          %v690 = vpack.c.b16 %v633, %v632
          %v691 = vpack.c.b16 %v635, %v634
          %v692 = vpack.c.b16 %v637, %v636
          %v693 = vpack.c.b16 %v639, %v638
          %v694 = vpack.c.b16 %v641, %v640
          %v695 = vpack.c.b16 %v643, %v642
          %v696 = vpack.c.b16 %v645, %v644
          %v697 = vpack.c.b16 %v647, %v646
          %v698 = vpack.c.b16 %v649, %v648
          %v699 = vpack.c.b16 %v651, %v650
          %v700 = vpack.c.b16 %v653, %v652
          %v701 = vpack.c.b16 %v655, %v654
          %v702 = vpack.c.b16 %v657, %v656
          %v703 = vpack.c.b16 %v659, %v658
          %v704 = vpack.c.b16 %v661, %v660
          %v705 = vpack.c.b16 %v663, %v662
          %v706 = vpack.c.b16 %v665, %v664
          %v707 = vpack.c.b16 %v667, %v666
          %v708 = vpack.c.b16 %v669, %v668
          %v709 = vpack.c.b16 %v671, %v670
          %v710 = vpack.c.b16 %v673, %v672
          %v711 = vpack.c.b16 %v675, %v674
          %v712 = vpack.c.b16 %v677, %v676
          %v713 = vpack.c.b16 %v679, %v678
          %v714 = vpack.c.b16 %v681, %v680
          %v715 = vpack.c.b16 %v683, %v682
          %748 = vmatpush.bf16.msra.mxu0 %v691
          %749 = vmatpush.bf16.msra.mxu0 %v690
          %750 = vmatpush.bf16.msra.mxu0 %v689
          %751 = vmatpush.bf16.msra.mxu0 %v688
          %752 = vmatpush.bf16.msra.mxu0 %v687
          %753 = vmatpush.bf16.msra.mxu0 %v686
          %754 = vmatpush.bf16.msra.mxu0 %v685
          %755 = vmatpush.bf16.msra.mxu0 %v684
          %756 = vmatmul.bf16.gmra.mxu0 %v548
          %v757 = vpop.f32.mrf.mxu0
          %v758 = vadd.f32 0.0, %v757
          %v759 = vpop.f32.mrf.mxu0
          %760 = vdwg.mxu0
          %761 = vmatpush.bf16.msra.mxu0 %v699
          %762 = vmatpush.bf16.msra.mxu0 %v698
          %763 = vmatpush.bf16.msra.mxu0 %v697
          %764 = vmatpush.bf16.msra.mxu0 %v696
          %765 = vmatpush.bf16.msra.mxu0 %v695
          %766 = vmatpush.bf16.msra.mxu0 %v694
          %767 = vmatpush.bf16.msra.mxu0 %v693
          %768 = vmatpush.bf16.msra.mxu0 %v692
          %769 = vmatmul.bf16.gmra.mxu0 %v549
          %v770 = vpop.f32.mrf.mxu0
          %v771 = vadd.f32 %v758, %v770
          %v772 = vpop.f32.mrf.mxu0
          %773 = vdwg.mxu0
          %774 = vmatpush.bf16.msra.mxu0 %v707
          %775 = vmatpush.bf16.msra.mxu0 %v706
          %776 = vmatpush.bf16.msra.mxu0 %v705
          %777 = vmatpush.bf16.msra.mxu0 %v704
          %778 = vmatpush.bf16.msra.mxu0 %v703
          %779 = vmatpush.bf16.msra.mxu0 %v702
          %780 = vmatpush.bf16.msra.mxu0 %v701
          %781 = vmatpush.bf16.msra.mxu0 %v700
          %782 = vmatmul.bf16.gmra.mxu0 %v550
          %v783 = vpop.f32.mrf.mxu0
          %v784 = vadd.f32 %v771, %v783
          %v785 = vpop.f32.mrf.mxu0
          %786 = vdwg.mxu0
          %787 = vmatpush.bf16.msra.mxu0 %v715
          %788 = vmatpush.bf16.msra.mxu0 %v714
          %789 = vmatpush.bf16.msra.mxu0 %v713
          %790 = vmatpush.bf16.msra.mxu0 %v712
          %791 = vmatpush.bf16.msra.mxu0 %v711
          %792 = vmatpush.bf16.msra.mxu0 %v710
          %793 = vmatpush.bf16.msra.mxu0 %v709
          %794 = vmatpush.bf16.msra.mxu0 %v708
          %795 = vmatmul.bf16.gmra.mxu0 %v551
          %v796 = vpop.f32.mrf.mxu0
          %v797 = vadd.f32 %v784, %v796
          %v798 = vpop.f32.mrf.mxu0
          %799 = vdwg.mxu0
          %v800 = vadd.f32 %v475, %v797
          %801 = vst [vmem:[#allocation2] sm:$0xff] %v800
        $region64: #{tpu_custom_call.1} parent=39 // pred_fallthru
          _
        %p802 = scmp.eq.s32.totalorder %s36, 1
        // Predicated region
        $region65: #{tpu_custom_call.1} parent=39 // pred_check
          %p803 = pneg %p802
        $region66: #{tpu_custom_call.1} parent=39 // pred_check_branch
          %805 = sbr.rel (%p803) target = $region68
        $region67: #{tpu_custom_call.1} parent=39 // pred_region
          %v806 = vld [vmem:[#allocation2] sm:$0xff]
          %v807 = vld [vmem:[%s2] sm:$0x1]
          %v809 = vperm.slane %v807, 0
          %v811 = vadd.f32 %v806, %v809
          %812 = vst [vmem:[#allocation2] sm:$0xff] %v811
          %v813 = vld [vmem:[#allocation2] sm:$0xff]
          %814 = vst [vmem:[#allocation11] sm:$0xff] %v813
        $region68: #{tpu_custom_call.1} parent=39 // pred_fallthru
          _
        %p815 = scmp.ge.s32.totalorder %s36, 2
        // Predicated region
        $region69: #{tpu_custom_call.1} parent=39 // pred_check
          %p816 = pneg %p815
        $region70: #{tpu_custom_call.1} parent=39 // pred_check_branch
          %818 = sbr.rel (%p816) target = $region72
        $region71: #{tpu_custom_call.1} parent=39 // pred_region
          %v819 = vld [vmem:[#allocation2] sm:$0xff]
          %v820 = vpack.c.bf16 %v819, %v819
          %v821 = vld [vmem:[%s393] sm:$0xff]
          %v822 = vld [vmem:[%s393 + $0x8] sm:$0xff]
          %v823 = vld [vmem:[%s393 + $0x10] sm:$0xff]
          %v824 = vld [vmem:[%s393 + $0x18] sm:$0xff]
          %v825 = vld [vmem:[%s393 + $0x20] sm:$0xff]
          %v826 = vld [vmem:[%s393 + $0x28] sm:$0xff]
          %v827 = vld [vmem:[%s393 + $0x30] sm:$0xff]
          %v828 = vld [vmem:[%s393 + $0x38] sm:$0xff]
          %v829 = vld [vmem:[%s393 + $0x40] sm:$0xff]
          %v830 = vld [vmem:[%s393 + $0x48] sm:$0xff]
          %v831 = vld [vmem:[%s393 + $0x50] sm:$0xff]
          %v832 = vld [vmem:[%s393 + $0x58] sm:$0xff]
          %v833 = vld [vmem:[%s393 + $0x60] sm:$0xff]
          %v834 = vld [vmem:[%s393 + $0x68] sm:$0xff]
          %v835 = vld [vmem:[%s393 + $0x70] sm:$0xff]
          %v836 = vld [vmem:[%s393 + $0x78] sm:$0xff]
          %v837 = vld [vmem:[%s393 + $0x80] sm:$0xff]
          %v838 = vld [vmem:[%s393 + $0x88] sm:$0xff]
          %v839 = vld [vmem:[%s393 + $0x90] sm:$0xff]
          %v840 = vld [vmem:[%s393 + $0x98] sm:$0xff]
          %v841 = vld [vmem:[%s393 + $0xa0] sm:$0xff]
          %v842 = vld [vmem:[%s393 + $0xa8] sm:$0xff]
          %v843 = vld [vmem:[%s393 + $0xb0] sm:$0xff]
          %v844 = vld [vmem:[%s393 + $0xb8] sm:$0xff]
          %v845 = vld [vmem:[%s393 + $0xc0] sm:$0xff]
          %v846 = vld [vmem:[%s393 + $0xc8] sm:$0xff]
          %v847 = vld [vmem:[%s393 + $0xd0] sm:$0xff]
          %v848 = vld [vmem:[%s393 + $0xd8] sm:$0xff]
          %v849 = vld [vmem:[%s393 + $0xe0] sm:$0xff]
          %v850 = vld [vmem:[%s393 + $0xe8] sm:$0xff]
          %v851 = vld [vmem:[%s393 + $0xf0] sm:$0xff]
          %v852 = vld [vmem:[%s393 + $0xf8] sm:$0xff]
          %v853 = vld [vmem:[%s403] sm:$0xf]
          %v855 = vperm.slane %v853, 0
          %v856 = vperm.slane %v853, 1
          %v857 = vperm.slane %v853, 2
          %v858 = vperm.slane %v853, 3
          %v895 = vunpack.c.l.b16 %v821
          %v896 = vunpack.c.h.b16 %v821
          %v897 = vunpack.c.l.b16 %v822
          %v898 = vunpack.c.h.b16 %v822
          %v899 = vunpack.c.l.b16 %v823
          %v900 = vunpack.c.h.b16 %v823
          %v901 = vunpack.c.l.b16 %v824
          %v902 = vunpack.c.h.b16 %v824
          %v903 = vunpack.c.l.b16 %v825
          %v904 = vunpack.c.h.b16 %v825
          %v905 = vunpack.c.l.b16 %v826
          %v906 = vunpack.c.h.b16 %v826
          %v907 = vunpack.c.l.b16 %v827
          %v908 = vunpack.c.h.b16 %v827
          %v909 = vunpack.c.l.b16 %v828
          %v910 = vunpack.c.h.b16 %v828
          %v911 = vunpack.c.l.b16 %v829
          %v912 = vunpack.c.h.b16 %v829
          %v913 = vunpack.c.l.b16 %v830
          %v914 = vunpack.c.h.b16 %v830
          %v915 = vunpack.c.l.b16 %v831
          %v916 = vunpack.c.h.b16 %v831
          %v917 = vunpack.c.l.b16 %v832
          %v918 = vunpack.c.h.b16 %v832
          %v919 = vunpack.c.l.b16 %v833
          %v920 = vunpack.c.h.b16 %v833
          %v921 = vunpack.c.l.b16 %v834
          %v922 = vunpack.c.h.b16 %v834
          %v923 = vunpack.c.l.b16 %v835
          %v924 = vunpack.c.h.b16 %v835
          %v925 = vunpack.c.l.b16 %v836
          %v926 = vunpack.c.h.b16 %v836
          %v927 = vunpack.c.l.b16 %v837
          %v928 = vunpack.c.h.b16 %v837
          %v929 = vunpack.c.l.b16 %v838
          %v930 = vunpack.c.h.b16 %v838
          %v931 = vunpack.c.l.b16 %v839
          %v932 = vunpack.c.h.b16 %v839
          %v933 = vunpack.c.l.b16 %v840
          %v934 = vunpack.c.h.b16 %v840
          %v935 = vunpack.c.l.b16 %v841
          %v936 = vunpack.c.h.b16 %v841
          %v937 = vunpack.c.l.b16 %v842
          %v938 = vunpack.c.h.b16 %v842
          %v939 = vunpack.c.l.b16 %v843
          %v940 = vunpack.c.h.b16 %v843
          %v941 = vunpack.c.l.b16 %v844
          %v942 = vunpack.c.h.b16 %v844
          %v943 = vunpack.c.l.b16 %v845
          %v944 = vunpack.c.h.b16 %v845
          %v945 = vunpack.c.l.b16 %v846
          %v946 = vunpack.c.h.b16 %v846
          %v947 = vunpack.c.l.b16 %v847
          %v948 = vunpack.c.h.b16 %v847
          %v949 = vunpack.c.l.b16 %v848
          %v950 = vunpack.c.h.b16 %v848
          %v951 = vunpack.c.l.b16 %v849
          %v952 = vunpack.c.h.b16 %v849
          %v953 = vunpack.c.l.b16 %v850
          %v954 = vunpack.c.h.b16 %v850
          %v955 = vunpack.c.l.b16 %v851
          %v956 = vunpack.c.h.b16 %v851
          %v957 = vunpack.c.l.b16 %v852
          %v958 = vunpack.c.h.b16 %v852
          %v959 = vpack.c.b16 %v899, %v895
          %v960 = vpack.c.b16 %v900, %v896
          %v961 = vpack.c.b16 %v901, %v897
          %v962 = vpack.c.b16 %v902, %v898
          %v963 = vpack.c.b16 %v907, %v903
          %v964 = vpack.c.b16 %v908, %v904
          %v965 = vpack.c.b16 %v909, %v905
          %v966 = vpack.c.b16 %v910, %v906
          %v967 = vpack.c.b16 %v915, %v911
          %v968 = vpack.c.b16 %v916, %v912
          %v969 = vpack.c.b16 %v917, %v913
          %v970 = vpack.c.b16 %v918, %v914
          %v971 = vpack.c.b16 %v923, %v919
          %v972 = vpack.c.b16 %v924, %v920
          %v973 = vpack.c.b16 %v925, %v921
          %v974 = vpack.c.b16 %v926, %v922
          %v975 = vpack.c.b16 %v931, %v927
          %v976 = vpack.c.b16 %v932, %v928
          %v977 = vpack.c.b16 %v933, %v929
          %v978 = vpack.c.b16 %v934, %v930
          %v979 = vpack.c.b16 %v939, %v935
          %v980 = vpack.c.b16 %v940, %v936
          %v981 = vpack.c.b16 %v941, %v937
          %v982 = vpack.c.b16 %v942, %v938
          %v983 = vpack.c.b16 %v947, %v943
          %v984 = vpack.c.b16 %v948, %v944
          %v985 = vpack.c.b16 %v949, %v945
          %v986 = vpack.c.b16 %v950, %v946
          %v987 = vpack.c.b16 %v955, %v951
          %v988 = vpack.c.b16 %v956, %v952
          %v989 = vpack.c.b16 %v957, %v953
          %v990 = vpack.c.b16 %v958, %v954
          %1023 = vmatpush.bf16.msra.mxu0 %v987
          %1024 = vmatpush.bf16.msra.mxu0 %v983
          %1025 = vmatpush.bf16.msra.mxu0 %v979
          %1026 = vmatpush.bf16.msra.mxu0 %v975
          %1027 = vmatpush.bf16.msra.mxu0 %v971
          %1028 = vmatpush.bf16.msra.mxu0 %v967
          %1029 = vmatpush.bf16.msra.mxu0 %v963
          %1030 = vmatpush.bf16.msra.mxu0 %v959
          %1031 = vmatmul.bf16.gmra.mxu0 %v820
          %v1032 = vpop.f32.mrf.mxu0
          %v1033 = vadd.f32 %v855, %v1032
          %v1034 = vpop.f32.mrf.mxu0
          %1035 = vdwg.mxu0
          %1036 = vmatpush.bf16.msra.mxu0 %v988
          %1037 = vmatpush.bf16.msra.mxu0 %v984
          %1038 = vmatpush.bf16.msra.mxu0 %v980
          %1039 = vmatpush.bf16.msra.mxu0 %v976
          %1040 = vmatpush.bf16.msra.mxu0 %v972
          %1041 = vmatpush.bf16.msra.mxu0 %v968
          %1042 = vmatpush.bf16.msra.mxu0 %v964
          %1043 = vmatpush.bf16.msra.mxu0 %v960
          %1044 = vmatmul.bf16.gmra.mxu0 %v820
          %v1045 = vpop.f32.mrf.mxu0
          %v1046 = vadd.f32 %v856, %v1045
          %v1047 = vpop.f32.mrf.mxu0
          %1048 = vdwg.mxu0
          %1049 = vmatpush.bf16.msra.mxu0 %v989
          %1050 = vmatpush.bf16.msra.mxu0 %v985
          %1051 = vmatpush.bf16.msra.mxu0 %v981
          %1052 = vmatpush.bf16.msra.mxu0 %v977
          %1053 = vmatpush.bf16.msra.mxu0 %v973
          %1054 = vmatpush.bf16.msra.mxu0 %v969
          %1055 = vmatpush.bf16.msra.mxu0 %v965
          %1056 = vmatpush.bf16.msra.mxu0 %v961
          %1057 = vmatmul.bf16.gmra.mxu0 %v820
          %v1058 = vpop.f32.mrf.mxu0
          %v1059 = vadd.f32 %v857, %v1058
          %v1060 = vpop.f32.mrf.mxu0
          %1061 = vdwg.mxu0
          %1062 = vmatpush.bf16.msra.mxu0 %v990
          %1063 = vmatpush.bf16.msra.mxu0 %v986
          %1064 = vmatpush.bf16.msra.mxu0 %v982
          %1065 = vmatpush.bf16.msra.mxu0 %v978
          %1066 = vmatpush.bf16.msra.mxu0 %v974
          %1067 = vmatpush.bf16.msra.mxu0 %v970
          %1068 = vmatpush.bf16.msra.mxu0 %v966
          %1069 = vmatpush.bf16.msra.mxu0 %v962
          %1070 = vmatmul.bf16.gmra.mxu0 %v820
          %v1071 = vpop.f32.mrf.mxu0
          %v1072 = vadd.f32 %v858, %v1071
          %v1073 = vpop.f32.mrf.mxu0
          %1074 = vdwg.mxu0
          %1075 = vst [vmem:[%s447] sm:$0xff] %v1033
          %1076 = vst [vmem:[%s447 + $0x8] sm:$0xff] %v1046
          %1077 = vst [vmem:[%s447 + $0x10] sm:$0xff] %v1059
          %1078 = vst [vmem:[%s447 + $0x18] sm:$0xff] %v1072
        $region72: #{tpu_custom_call.1} parent=39 // pred_fallthru
          _
        %s1079 = sand.u32 %s232, 1
        %s1080 = scalar_lea.sflag [#allocation13], %s1079
        %s1081 = sand.u32 %s232, 1
        %s1082 = smul.addr %s1081, 32
        %s1083 = scalar_lea.vmem [#allocation12], %s1082
        // Predicated region
        $region73: #{tpu_custom_call.1} parent=39 // pred_check
          %p1084 = pneg %p208
        $region74: #{tpu_custom_call.1} parent=39 // pred_check_branch
          %1086 = sbr.rel (%p1084) target = $region76
        $region75: #{tpu_custom_call.1} parent=39 // pred_region
          %1088 = vsyncadd [#allocation5], 0
          %s1089 = smul.addr %s35, 8
          %s1090 = scalar_lea.hbm %s5, %s1089
          %s1092 = sshll.u32 [#allocation11], 4
          %s1093 = int_to_ptr.vmem [resolvable:$true] %s1092
          %s1094 = sshll.u32 %s1090, 4
          %s1095 = int_to_ptr.hbm [resolvable:$true] %s1094
          %1097 = dma.vmem_to_hbm [thread:$0]  %s1093, 128, %s1095, [#allocation5]
        $region76: #{tpu_custom_call.1} parent=39 // pred_fallthru
          _
        // Predicated region
        $region77: #{tpu_custom_call.1} parent=39 // pred_check
          %p1098 = pneg %p242
        $region78: #{tpu_custom_call.1} parent=39 // pred_check_branch
          %1100 = sbr.rel (%p1098) target = $region80
        $region79: #{tpu_custom_call.1} parent=39 // pred_region
          %s1101 = ssub.s32 %s36, 2
          %p1102 = scmp.gt.s32.totalorder %s1101, 0
          %s1103 = scalar_select %p1102, %s1101, 0
          %s1104 = smul.u32 4, %s1103
          %1106 = vsyncadd %s1080, 0
          %s1107 = smul.addr %s35, 8
          %s1108 = sadd.s32 %s1104, %s1107
          %s1109 = smul.addr %s1108, 8
          %s1110 = scalar_lea.hbm %s6, %s1109
          %s1112 = sshll.u32 %s1083, 4
          %s1113 = int_to_ptr.vmem [resolvable:$true] %s1112
          %s1114 = sshll.u32 %s1110, 4
          %s1115 = int_to_ptr.hbm [resolvable:$true] %s1114
          %1117 = dma.vmem_to_hbm [thread:$0]  %s1113, 512, %s1115, %s1080
        $region80: #{tpu_custom_call.1} parent=39 // pred_fallthru
          _
        // Predicated region
        $region81: #{tpu_custom_call.1} parent=39 // pred_check
          %p1118 = pneg %p208
        $region82: #{tpu_custom_call.1} parent=39 // pred_check_branch
          %1120 = sbr.rel (%p1118) target = $region84
        $region83: #{tpu_custom_call.1} parent=39 // pred_region
          %1122 = dma.done [#allocation5], 128
        $region84: #{tpu_custom_call.1} parent=39 // pred_fallthru
          _
      $region40: #{tpu_custom_call.1} parent=5 // pred_fallthru
        _
      %p1123 = scmp.le.s32.totalorder 2, %s26
      // Predicated region
      $region85: #{tpu_custom_call.1} parent=5 // pred_check
        %p1124 = pneg %p1123
      $region86: #{tpu_custom_call.1} parent=5 // pred_check_branch
        %1126 = sbr.rel (%p1124) target = $region88
      $region87: #{tpu_custom_call.1} parent=5 // pred_region
        %s1127 = ssub.s32 %s26, 2
        // Predicated region
        $region89: #{tpu_custom_call.1} parent=87 // pred_check
          %p1128 = pneg %p248
        $region90: #{tpu_custom_call.1} parent=87 // pred_check_branch
          %1130 = sbr.rel (%p1128) target = $region92
        $region91: #{tpu_custom_call.1} parent=87 // pred_region
          %s1131 = sand.u32 %s233, 1
          %s1132 = scalar_lea.sflag [#allocation13], %s1131
          %s1133 = sand.u32 %s233, 1
          %s1134 = smul.addr %s1133, 32
          %s1135 = scalar_lea.vmem [#allocation12], %s1134
          %1137 = dma.done %s1132, 512
        $region92: #{tpu_custom_call.1} parent=87 // pred_fallthru
          _
      $region88: #{tpu_custom_call.1} parent=5 // pred_fallthru
        _
    $region6: #{tpu_custom_call.1} parent=1 // loop_footer
      %s30 = sadd.s32 1, %s26
    $region7: #{tpu_custom_call.1} parent=1 // loop_footer_branch
      %25 = sbr.rel target = $region3
    $region8: #{tpu_custom_call.1} parent=1 // loop_exit
      _
    %1138 = vsyncpa [#allocation4], 1
    %s1139 = scalar_lea.sflag [#allocation4], 1
    %1140 = vsyncpa %s1139, 1
    %1141 = vsyncpa [#allocation7], 1
    %s1142 = scalar_lea.sflag [#allocation7], 1
    %1143 = vsyncpa %s1142, 1
    %1144 = vsyncpa [#allocation10], 1
    %s1145 = scalar_lea.sflag [#allocation10], 1
    %1146 = vsyncpa %s1145, 1
    %1147 = vsyncpa [#allocation5], 1
    %s1148 = scalar_lea.sflag [#allocation5], 1
    %1149 = vsyncpa %s1148, 1
    %1150 = vsyncpa [#allocation13], 1
    %s1151 = scalar_lea.sflag [#allocation13], 1
    %1152 = vsyncpa %s1151, 1

</llo_original>
